<compile_context>
chip_gen: v7x
topology: tpu7x:2x2x1
jax: 0.10.0
libtpu: 0.0.40
codegen_flags: <defaults>
</compile_context>

<pallas_src>
import functools
import math

import jax
import jax.numpy as jnp
from jax import lax
from jax.experimental import pallas as pl
from jax.experimental.pallas import tpu as pltpu

MEAN = 0.0
STD = 25.0
LANES = 128
TILE_ROWS = 512          # (512, 128) f32 block = 256 KiB; ~1 MiB VMEM with dbl-buffered in+out

# 32-bit mixing constants (murmur3 fmix32 + salts).
_K_MUL1 = 0x85EBCA6B
_K_MUL2 = 0xC2B2AE35
_K_GOLD = 0x9E3779B9
_K_SALT = 0x68E31DA4


def _fmix32(h):
    """murmur3 32-bit finalizer (bijective avalanche mix) on uint32 arrays."""
    h = h ^ (h >> 16)
    h = h * jnp.uint32(_K_MUL1)
    h = h ^ (h >> 13)
    h = h * jnp.uint32(_K_MUL2)
    h = h ^ (h >> 16)
    return h


def _add_noise_kernel(seed_ref, x_ref, o_ref, *, scale, shift):
    """out = clamp(x + z*std/255 + mean/255, -1, 1), z ~ N(0,1) per element."""
    rows, lanes = x_ref.shape            # static block shape
    tile = pl.program_id(0)

    # Unique counter per element: global flattened index (tile-invariant).
    row = lax.broadcasted_iota(jnp.int32, (rows, lanes), 0)
    col = lax.broadcasted_iota(jnp.int32, (rows, lanes), 1)
    idx_u = ((tile * rows + row) * lanes + col).astype(jnp.uint32)

    # Mix the seed on the scalar core in int32 (wrapping), then into the stream.
    seed = seed_ref[0]
    salt = (seed * jnp.int32(0x3C6EF35F) + jnp.int32(0x1B873593)).astype(jnp.uint32)

    base = (idx_u * jnp.uint32(_K_GOLD)) ^ salt
    b1 = _fmix32(base)
    b2 = _fmix32(b1 ^ jnp.uint32(_K_SALT))

    # 24-bit uniforms: u1 in (0, 1] (safe for log), u2 in [0, 1).
    inv24 = jnp.float32(1.0 / 16777216.0)
    u1 = ((b1 >> 8).astype(jnp.int32).astype(jnp.float32) + 1.0) * inv24
    u2 = (b2 >> 8).astype(jnp.int32).astype(jnp.float32) * inv24

    # Box-Muller -> standard normal (log/sqrt/cos on the EUP, hidden under DMA).
    r = jnp.sqrt(-2.0 * jnp.log(u1))
    z = r * jnp.cos(jnp.float32(2.0 * math.pi) * u2)

    # Folded affine: (mean + std*z)/255 == z*scale + shift.
    y = x_ref[...].astype(jnp.float32) + (z * scale + shift)
    o_ref[...] = jnp.clip(y, -1.0, 1.0).astype(o_ref.dtype)


def add_gaussian_noise(x, seed, mean=MEAN, std=STD, tile_rows=TILE_ROWS):
    """Elementwise clamp(x + N(mean, std)/255, -1, 1). Works for any shape."""
    orig_shape = x.shape
    orig_dtype = x.dtype
    n = x.size
    x_flat = jnp.ravel(x)

    # Lane-dense [rows, 128] slab. Fast path (typical NCHW image batches):
    # numel % 128 == 0 -> plain (free) reshape, no pad and no post-slice copy.
    if n % LANES == 0:
        rows = n // LANES
        pad = 0
    else:
        # TODO(synk): handle the ragged tail with an in-kernel masked store
        # instead of a padded copy (only hit when numel % 128 != 0).
        rows = -(-n // LANES)
        pad = rows * LANES - n
        x_flat = jnp.pad(x_flat, (0, pad))
    x2 = x_flat.reshape(rows, LANES)

    # Tile rows: multiple of 8 (vreg sublanes); ragged last tile is masked by
    # Pallas. Tiny inputs fall back to a single full-extent block.
    if rows % 8 == 0:
        tr = min(tile_rows, rows)
    elif rows <= tile_rows:
        tr = rows
    else:
        tr = tile_rows
    grid = (pl.cdiv(rows, tr),)

    kernel = functools.partial(
        _add_noise_kernel,
        scale=float(std) / 255.0,
        shift=float(mean) / 255.0,
    )

    out2 = pl.pallas_call(
        kernel,
        out_shape=jax.ShapeDtypeStruct((rows, LANES), orig_dtype),
        grid_spec=pltpu.PrefetchScalarGridSpec(
            num_scalar_prefetch=1,                     # seed lands in SMEM
            grid=grid,
            in_specs=[pl.BlockSpec((tr, LANES), lambda i, s: (i, 0))],
            out_specs=pl.BlockSpec((tr, LANES), lambda i, s: (i, 0)),
        ),
        compiler_params=pltpu.CompilerParams(
            # Each tile is independent -> shard across both TCs on v7x.
            dimension_semantics=("parallel",),
        ),
    )(jnp.asarray([seed], dtype=jnp.int32), x2)

    if pad:
        return out2.reshape(-1)[:n].reshape(orig_shape)
    return out2.reshape(orig_shape)


if __name__ == "__main__":
    key = jax.random.PRNGKey(0)
    # Small NCHW image batch consistent with the module's intended use.
    x = jax.random.uniform(key, (2, 4, 16, 16), dtype=jnp.float32,
                           minval=-1.0, maxval=1.0)

    out = add_gaussian_noise(x, seed=0)
    out = jax.block_until_ready(out)

    # Shape / dtype / clamp-range sanity.
    assert out.shape == x.shape
    assert out.dtype == x.dtype
    assert bool(jnp.all(out <= 1.0)) and bool(jnp.all(out >= -1.0))

    # Noise-statistics sanity far from the clamp boundary:
    # added noise should look like N(0, 25/255 ~= 0.098). Loose bounds.
    noise = out - x
    interior = jnp.abs(x) < 0.7
    cnt = jnp.sum(interior.astype(jnp.float32))
    m = jnp.sum(jnp.where(interior, noise, 0.0)) / cnt
    var = jnp.sum(jnp.where(interior, (noise - m) ** 2, 0.0)) / cnt
    n_std = float(jnp.sqrt(var))
    n_mean = float(m)
    assert 0.04 < n_std < 0.20, n_std
    assert abs(n_mean) < 0.05, n_mean

    print("KERNEL_OK")
</pallas_src>

<mosaic_0001>
module attributes {stable_mosaic.version = 11 : i64} {
  func.func @_add_noise_kernel(%arg0: i32, %arg1: memref<1xi32, #tpu.memory_space<smem>>, %arg2: memref<16x128xf32, #tpu.memory_space<vmem>>, %arg3: memref<16x128xf32, #tpu.memory_space<vmem>>) attributes {dimension_semantics = [#tpu.dimension_semantics<parallel>], iteration_bounds = array<i64: 1>, scalar_prefetch = 1 : i64, scratch_operands = 0 : i64, tpu.core_type = #tpu.core_type<tc>, window_params = [{transform_indices = @transform_0, window_bounds = array<i64: 16, 128>}, {transform_indices = @transform_1, window_bounds = array<i64: 16, 128>}]} {
    %0 = tpu.iota {dimensions = array<i32: 0>} : vector<16x128xi32>
    %1 = tpu.iota {dimensions = array<i32: 1>} : vector<16x128xi32>
    %c16_i32 = arith.constant 16 : i32
    %2 = arith.muli %arg0, %c16_i32 : i32
    %3 = vector.broadcast %2 : i32 to vector<16x128xi32>
    %4 = arith.addi %3, %0 : vector<16x128xi32>
    %c128_i32 = arith.constant 128 : i32
    %5 = vector.broadcast %c128_i32 : i32 to vector<16x128xi32>
    %6 = arith.muli %4, %5 : vector<16x128xi32>
    %7 = arith.addi %6, %1 : vector<16x128xi32>
    %c0 = arith.constant 0 : index
    %8 = memref.load %arg1[%c0] : memref<1xi32, #tpu.memory_space<smem>>
    %c1013904223_i32 = arith.constant 1013904223 : i32
    %9 = arith.muli %8, %c1013904223_i32 : i32
    %c461845907_i32 = arith.constant 461845907 : i32
    %10 = arith.addi %9, %c461845907_i32 : i32
    %c-1640531527_i32 = arith.constant -1640531527 : i32
    %11 = vector.broadcast %c-1640531527_i32 : i32 to vector<16x128xi32>
    %12 = arith.muli %7, %11 : vector<16x128xi32>
    %13 = vector.broadcast %10 : i32 to vector<16x128xi32>
    %14 = arith.xori %12, %13 : vector<16x128xi32>
    %c16_i32_0 = arith.constant 16 : i32
    %15 = vector.broadcast %c16_i32_0 : i32 to vector<16x128xi32>
    %16 = arith.shrui %14, %15 : vector<16x128xi32>
    %17 = arith.xori %14, %16 : vector<16x128xi32>
    %c-2048144789_i32 = arith.constant -2048144789 : i32
    %18 = vector.broadcast %c-2048144789_i32 : i32 to vector<16x128xi32>
    %19 = arith.muli %17, %18 : vector<16x128xi32>
    %c13_i32 = arith.constant 13 : i32
    %20 = vector.broadcast %c13_i32 : i32 to vector<16x128xi32>
    %21 = arith.shrui %19, %20 : vector<16x128xi32>
    %22 = arith.xori %19, %21 : vector<16x128xi32>
    %c-1028477387_i32 = arith.constant -1028477387 : i32
    %23 = vector.broadcast %c-1028477387_i32 : i32 to vector<16x128xi32>
    %24 = arith.muli %22, %23 : vector<16x128xi32>
    %c16_i32_1 = arith.constant 16 : i32
    %25 = vector.broadcast %c16_i32_1 : i32 to vector<16x128xi32>
    %26 = arith.shrui %24, %25 : vector<16x128xi32>
    %27 = arith.xori %24, %26 : vector<16x128xi32>
    %c1759714724_i32 = arith.constant 1759714724 : i32
    %28 = vector.broadcast %c1759714724_i32 : i32 to vector<16x128xi32>
    %29 = arith.xori %27, %28 : vector<16x128xi32>
    %c16_i32_2 = arith.constant 16 : i32
    %30 = vector.broadcast %c16_i32_2 : i32 to vector<16x128xi32>
    %31 = arith.shrui %29, %30 : vector<16x128xi32>
    %32 = arith.xori %29, %31 : vector<16x128xi32>
    %c-2048144789_i32_3 = arith.constant -2048144789 : i32
    %33 = vector.broadcast %c-2048144789_i32_3 : i32 to vector<16x128xi32>
    %34 = arith.muli %32, %33 : vector<16x128xi32>
    %c13_i32_4 = arith.constant 13 : i32
    %35 = vector.broadcast %c13_i32_4 : i32 to vector<16x128xi32>
    %36 = arith.shrui %34, %35 : vector<16x128xi32>
    %37 = arith.xori %34, %36 : vector<16x128xi32>
    %c-1028477387_i32_5 = arith.constant -1028477387 : i32
    %38 = vector.broadcast %c-1028477387_i32_5 : i32 to vector<16x128xi32>
    %39 = arith.muli %37, %38 : vector<16x128xi32>
    %c16_i32_6 = arith.constant 16 : i32
    %40 = vector.broadcast %c16_i32_6 : i32 to vector<16x128xi32>
    %41 = arith.shrui %39, %40 : vector<16x128xi32>
    %42 = arith.xori %39, %41 : vector<16x128xi32>
    %c8_i32 = arith.constant 8 : i32
    %43 = vector.broadcast %c8_i32 : i32 to vector<16x128xi32>
    %44 = arith.shrui %27, %43 : vector<16x128xi32>
    %45 = arith.sitofp %44 : vector<16x128xi32> to vector<16x128xf32>
    %cst = arith.constant 1.000000e+00 : f32
    %46 = vector.broadcast %cst : f32 to vector<16x128xf32>
    %47 = arith.addf %45, %46 : vector<16x128xf32>
    %cst_7 = arith.constant 5.96046448E-8 : f32
    %48 = vector.broadcast %cst_7 : f32 to vector<16x128xf32>
    %49 = arith.mulf %47, %48 : vector<16x128xf32>
    %c8_i32_8 = arith.constant 8 : i32
    %50 = vector.broadcast %c8_i32_8 : i32 to vector<16x128xi32>
    %51 = arith.shrui %42, %50 : vector<16x128xi32>
    %52 = arith.sitofp %51 : vector<16x128xi32> to vector<16x128xf32>
    %cst_9 = arith.constant 5.96046448E-8 : f32
    %53 = vector.broadcast %cst_9 : f32 to vector<16x128xf32>
    %54 = arith.mulf %52, %53 : vector<16x128xf32>
    %55 = math.log %49 : vector<16x128xf32>
    %cst_10 = arith.constant -2.000000e+00 : f32
    %56 = vector.broadcast %cst_10 : f32 to vector<16x128xf32>
    %57 = arith.mulf %56, %55 : vector<16x128xf32>
    %58 = math.sqrt %57 : vector<16x128xf32>
    %cst_11 = arith.constant 6.28318548 : f32
    %59 = vector.broadcast %cst_11 : f32 to vector<16x128xf32>
    %60 = arith.mulf %59, %54 : vector<16x128xf32>
    %61 = math.cos %60 : vector<16x128xf32>
    %62 = arith.mulf %58, %61 : vector<16x128xf32>
    %c0_12 = arith.constant 0 : index
    %c0_13 = arith.constant 0 : index
    %63 = vector.load %arg2[%c0_12, %c0_13] : memref<16x128xf32, #tpu.memory_space<vmem>>, vector<16x128xf32>
    %cst_14 = arith.constant 0.0980392172 : f32
    %64 = vector.broadcast %cst_14 : f32 to vector<16x128xf32>
    %65 = arith.mulf %62, %64 : vector<16x128xf32>
    %cst_15 = arith.constant 0.000000e+00 : f32
    %66 = vector.broadcast %cst_15 : f32 to vector<16x128xf32>
    %67 = arith.addf %65, %66 : vector<16x128xf32>
    %68 = arith.addf %63, %67 : vector<16x128xf32>
    %cst_16 = arith.constant -1.000000e+00 : f32
    %cst_17 = arith.constant 1.000000e+00 : f32
    %69 = vector.broadcast %cst_16 : f32 to vector<16x128xf32>
    %70 = arith.maximumf %69, %68 : vector<16x128xf32>
    %71 = vector.broadcast %cst_17 : f32 to vector<16x128xf32>
    %72 = arith.minimumf %71, %70 : vector<16x128xf32>
    %c0_18 = arith.constant 0 : index
    %c0_19 = arith.constant 0 : index
    %73 = vector.load %arg3[%c0_18, %c0_19] : memref<16x128xf32, #tpu.memory_space<vmem>>, vector<16x128xf32>
    tpu.vector_store %arg3[%c0_18, %c0_19], %72 {strides = array<i32>} : memref<16x128xf32, #tpu.memory_space<vmem>>, vector<16x128xf32>,
    return
  }
  func.func @transform_0(%arg0: i32, %arg1: memref<1xi32, #tpu.memory_space<smem>>) -> (i32, i32) {
    %c0_i32 = arith.constant 0 : i32
    %c0_i32_0 = arith.constant 0 : i32
    return %arg0, %c0_i32 : i32, i32
  }
  func.func @transform_1(%arg0: i32, %arg1: memref<1xi32, #tpu.memory_space<smem>>) -> (i32, i32) {
    %c0_i32 = arith.constant 0 : i32
    %c0_i32_0 = arith.constant 0 : i32
    return %arg0, %c0_i32 : i32, i32
  }
}

</mosaic_0001>

<llo_original>
// kernel: tpu_custom_call.1
$region0: #{tpu_custom_call.1}
  #allocation0 [shape = 'u32[]', space=smem, size = 0x4, offset = 0x4, fixed_abs, tag = 'smem constant byte address 0x4 - core index']
  #allocation1 [shape = 'u32[144,128]{1,0:T(1,128)}', space=vmem, size = 0x12000, scoped, tag = 'internal scratch']
  #allocation2 [shape = 's32[1]{0}', space=sflag, size = 0x4, scoped, tag = 'scoped memory for tpu_custom_call.1']
  #allocation3 [shape = 's32[1]{0:T(128)S(6)}', space=smem, size = 0x200, scoped, tag = 'prefetched SMEM operand 0']
  %s0 = inlined_call_operand.<no memory space> [shape: s32[1], index: 0, kind: input, shape index: {}]
  %s1 = inlined_call_operand.hbm [shape: f32[16,128], index: 1, kind: input, shape index: {}]
  %s2 = inlined_call_operand.hbm [shape: f32[16,128], index: 2, kind: output, shape index: {}]
  %s3 = sld [smem:[#allocation0]]
  $region18: #{tpu_custom_call.1} parent=0
    _
  %s5 = ssub.s32 1, %s3
  %s6 = scalar_select 0, %s5, %s3
  %7 = sst [smem:[#allocation3]] %s0
  $region1: #{tpu_custom_call.1} parent=0
    #allocation4 [shape = 'u8[8192]{0}', space=vmem, size = 0x2000, scoped, tag = 'input window, operand 1, single buffered']
    #allocation5 [shape = 's32[1]{0}', space=sflag, size = 0x4, scoped, tag = 'scoped memory for tpu_custom_call.1']
    #allocation6 [shape = 's32[1]{0}', space=sflag, size = 0x4, scoped, tag = 'scoped memory for tpu_custom_call.1']
    #allocation7 [shape = 'u8[8192]{0}', space=vmem, size = 0x2000, scoped, tag = 'output window, operand 0, single buffered']
    %8 = vsyncpa [#allocation5], 0
    %9 = vsyncpa [#allocation6], 0
    // Predicated region
    $region2: #{tpu_custom_call.1} parent=1 // pred_check
      _
    $region3: #{tpu_custom_call.1} parent=1 // pred_check_branch
      %11 = sbr.rel (0) target = $region5
    $region4: #{tpu_custom_call.1} parent=1 // pred_region
      %s13 = ssub.s32 256, 256
      %14 = vsyncadd [#allocation5], %s13
      %s15 = sshll.u32 [#allocation4], 4
      %s16 = int_to_ptr.vmem [resolvable:$true] %s15
      %21 = dma.hbm_to_vmem [thread:$0]  %s1, 256, %s16, [#allocation5], 128, 128, 8
    $region5: #{tpu_custom_call.1} parent=1 // pred_fallthru
      _
    // Predicated region
    $region6: #{tpu_custom_call.1} parent=1 // pred_check
      _
    $region7: #{tpu_custom_call.1} parent=1 // pred_check_branch
      %23 = sbr.rel (0) target = $region9
    $region8: #{tpu_custom_call.1} parent=1 // pred_region
      %24 = dma.done [#allocation5], 256
    $region9: #{tpu_custom_call.1} parent=1 // pred_fallthru
      _
    %v25 = vlaneseq
    %v26 = vshrl.u32 %v25, 7
    %v27 = vadd.s32 %v26, 8
    %v28 = vlaneseq
    %v29 = vand.u32 %v28, 127
    %s30 = smul.u32 0, 16
    %v31 = vstv %s30
    %v32 = vadd.s32 %v31, %v26
    %v33 = vadd.s32 %v31, %v27
    %v34 = vmul.u32 %v32, 128
    %v35 = vmul.u32 %v33, 128
    %v36 = vadd.s32 %v34, %v29
    %v37 = vadd.s32 %v35, %v29
    %s38 = sld [smem:[#allocation3]]
    %s39 = smul.u32 %s38, 1013904223
    %s40 = sadd.s32 %s39, 461845907
    %v41 = vmul.u32 %v36, 2654435769
    %v42 = vmul.u32 %v37, 2654435769
    %v43 = vstv %s40
    %v44 = vxor.u32 %v41, %v43
    %v45 = vxor.u32 %v42, %v43
    %v46 = vshrl.u32 %v44, 16
    %v47 = vshrl.u32 %v45, 16
    %v48 = vxor.u32 %v44, %v46
    %v49 = vxor.u32 %v45, %v47
    %v50 = vmul.u32 %v48, 2246822507
    %v51 = vmul.u32 %v49, 2246822507
    %v52 = vshrl.u32 %v50, 13
    %v53 = vshrl.u32 %v51, 13
    %v54 = vxor.u32 %v50, %v52
    %v55 = vxor.u32 %v51, %v53
    %v56 = vmul.u32 %v54, 3266489909
    %v57 = vmul.u32 %v55, 3266489909
    %v58 = vshrl.u32 %v56, 16
    %v59 = vshrl.u32 %v57, 16
    %v60 = vxor.u32 %v56, %v58
    %v61 = vxor.u32 %v57, %v59
    %v62 = vxor.u32 %v60, 1759714724
    %v63 = vxor.u32 %v61, 1759714724
    %v64 = vshrl.u32 %v62, 16
    %v65 = vshrl.u32 %v63, 16
    %v66 = vxor.u32 %v62, %v64
    %v67 = vxor.u32 %v63, %v65
    %v68 = vmul.u32 %v66, 2246822507
    %v69 = vmul.u32 %v67, 2246822507
    %v70 = vshrl.u32 %v68, 13
    %v71 = vshrl.u32 %v69, 13
    %v72 = vxor.u32 %v68, %v70
    %v73 = vxor.u32 %v69, %v71
    %v74 = vmul.u32 %v72, 3266489909
    %v75 = vmul.u32 %v73, 3266489909
    %v76 = vshrl.u32 %v74, 16
    %v77 = vshrl.u32 %v75, 16
    %v78 = vxor.u32 %v74, %v76
    %v79 = vxor.u32 %v75, %v77
    %v80 = vshrl.u32 %v60, 8
    %v81 = vshrl.u32 %v61, 8
    %v82 = vcvt.s32.f32 %v80
    %v83 = vcvt.s32.f32 %v81
    %v84 = vadd.f32 %v82, 1.0
    %v85 = vadd.f32 %v83, 1.0
    %v86 = vmul.f32 %v84, 5.9604645e-08
    %v87 = vmul.f32 %v85, 5.9604645e-08
    %v88 = vshrl.u32 %v78, 8
    %v89 = vshrl.u32 %v79, 8
    %v90 = vcvt.s32.f32 %v88
    %v91 = vcvt.s32.f32 %v89
    %v92 = vmul.f32 %v90, 5.9604645e-08
    %v93 = vmul.f32 %v91, 5.9604645e-08
    %v94 = vlog2.pop %v86
    %v95 = vmul.f32 %v94, 0.6931472
    %v96 = vlog2.pop %v87
    %v97 = vmul.f32 %v96, 0.6931472
    %v98 = vmul.f32 %v95, -2.0
    %v99 = vmul.f32 %v97, -2.0
    %v100 = vrsqrt.pop %v98
    %v101 = vmul.f32 %v98, %v100
    %vm102 = vcmp.eq.f32.partialorder %v98, inf
    %v103 = vsel %vm102, %v98, %v101
    %vm104 = vcmp.eq.f32.partialorder %v98, 0.0
    %v105 = vand.u32 %v98, 2147483648
    %v106 = vsel %vm104, %v105, %v103
    %v107 = vrsqrt.pop %v99
    %v108 = vmul.f32 %v99, %v107
    %vm109 = vcmp.eq.f32.partialorder %v99, inf
    %v110 = vsel %vm109, %v99, %v108
    %vm111 = vcmp.eq.f32.partialorder %v99, 0.0
    %v112 = vand.u32 %v99, 2147483648
    %v113 = vsel %vm111, %v112, %v110
    %v114 = vmul.f32 %v92, 6.2831855
    %v115 = vmul.f32 %v93, 6.2831855
    %v116 = vand.u32 2147483647, %v114
    %vm117 = vcmp.le.f32.partialorder %v116, 0.7853982
    %vm118 = vcmp.lt.s32.totalorder %v114, 0
    %v119 = vand.u32 %v114, 2139095040
    %v120 = vshrl.u32 %v119, 23
    %v121 = vsub.s32 %v120, 127
    %v122 = vand.u32 2147483647, %v114
    %v123 = vand.u32 %v122, 8388607
    %v124 = vor.u32 %v123, 8388608
    %v125 = vsub.s32 0, %v124
    %v126 = vadd.s32 %v121, 1
    %vm127 = vcmp.gt.s32.totalorder %v126, 0
    %v128 = vsel %vm127, %v126, 0
    %v129 = vshrl.u32 %v128, 5
    %v130 = vand.u32 %v128, 31
    %v131 = vsub.s32 32, %v130
    %v132 = vshrl.u32 683565275, %v131
    %v133 = vshll.u32 683565275, %v130
    %v134 = vshrl.u32 2475754826, %v131
    %v135 = vor.u32 %v133, %v134
    %v136 = vshll.u32 2475754826, %v130
    %v137 = vshrl.u32 2131351028, %v131
    %v138 = vor.u32 %v136, %v137
    %v139 = vshll.u32 2131351028, %v130
    %v140 = vshrl.u32 2102212464, %v131
    %v141 = vor.u32 %v139, %v140
    %v142 = vshll.u32 2102212464, %v130
    %v143 = vshrl.u32 920167782, %v131
    %v144 = vor.u32 %v142, %v143
    %v145 = vshll.u32 920167782, %v130
    %v146 = vshrl.u32 1326507024, %v131
    %v147 = vor.u32 %v145, %v146
    %vm148 = vcmp.lt.s32.totalorder %v129, 1
    %vm149 = vcmp.lt.s32.totalorder %v129, 2
    %vm150 = vcmp.lt.s32.totalorder %v129, 3
    %vm151 = vcmp.lt.s32.totalorder %v129, 4
    %v152 = vsel %vm148, %v132, %v135
    %v153 = vsel %vm151, %v141, 2102212464
    %v154 = vsel %vm150, %v138, %v153
    %v155 = vsel %vm149, %v152, %v154
    %v156 = vsel %vm148, %v135, %v138
    %v157 = vsel %vm151, %v144, 920167782
    %v158 = vsel %vm150, %v141, %v157
    %v159 = vsel %vm149, %v156, %v158
    %v160 = vsel %vm148, %v138, %v141
    %v161 = vsel %vm151, %v147, 1326507024
    %v162 = vsel %vm150, %v144, %v161
    %v163 = vsel %vm149, %v160, %v162
    %v164 = vshll.u32 %v124, 8
    %v165 = vmul.u32.u64.compose %v164, %v163
    %v166 = vextract.low.u32 %v165
    %v167 = vextract.high.u32 %v165
    %v168 = vmul.u32.u64.compose %v164, %v159
    %v169 = vextract.low.u32 %v168
    %v170 = vextract.high.u32 %v168
    %v171 = vmul.u32 %v164, %v155
    %v172 = vadd.s32 %v167, %v169
    %vm173 = vc.u32 %v167, %v169
    %v174 = vadd.s32 %v170, 1
    %v175 = vsel %vm173, %v174, %v170
    %v176 = vadd.s32 %v171, %v175
    %v177 = vadd.s32 %v176, 536870912
    %v178 = vshrl.u32 %v177, 30
    %v179 = vshll.u32 %v178, 30
    %v180 = vsub.s32 %v176, %v179
    %vm181 = vcmp.lt.s32.totalorder %v180, 0
    %v182 = vsub.s32 0, %v180
    %v183 = vsel %vm181, %v182, %v180
    %v184 = vclz %v183
    %v185 = vsub.s32 %v184, 2
    %vm186 = vcmp.gt.s32.totalorder 0, %v185
    %v187 = vsel %vm186, 0, %v185
    %v188 = vsub.s32 32, %v187
    %v189 = vshll.u32 %v180, %v187
    %v190 = vshrl.u32 %v172, %v188
    %v191 = vor.u32 %v189, %v190
    %v192 = vsub.s32 4294967266, %v187
    %v193 = vadd.s32 %v192, 127
    %v194 = vshll.u32 %v193, 23
    %v195 = vor.u32 4788187, %v194
    %v196 = vand.u32 2147483647, %v195
    %v198 = vcvt.s32.f32 %v191
    %v199 = vmul.f32 %v198, %v196
    %v200 = vxor.u32 %v199, 2147483648
    %v201 = vsel %vm118, %v200, %v199
    %v202 = vsub.s32 4, %v178
    %v203 = vsel %vm118, %v202, %v178
    %v204 = vsel %vm117, %v114, %v201
    %v205 = vsel %vm117, 0, %v203
    %v206 = vcosq.f32.pop %v204
    %v207 = vsinq.f32.pop %v204
    %vm208 = vweird.f32 %v114
    %v209 = vand.u32 %v205, 3
    %vm210 = vcmp.lt.s32.totalorder %v209, 2
    %vm211 = vcmp.eq.s32.totalorder %v209, 0
    %v212 = vxor.u32 %v207, 2147483648
    %v213 = vsel %vm211, %v206, %v212
    %vm214 = vcmp.eq.s32.totalorder %v209, 2
    %v215 = vxor.u32 %v206, 2147483648
    %v216 = vsel %vm214, %v215, %v207
    %v217 = vsel %vm210, %v213, %v216
    %v218 = vsel %vm208, nan, %v217
    %v219 = vand.u32 2147483647, %v115
    %vm220 = vcmp.le.f32.partialorder %v219, 0.7853982
    %vm221 = vcmp.lt.s32.totalorder %v115, 0
    %v222 = vand.u32 %v115, 2139095040
    %v223 = vshrl.u32 %v222, 23
    %v224 = vsub.s32 %v223, 127
    %v225 = vand.u32 2147483647, %v115
    %v226 = vand.u32 %v225, 8388607
    %v227 = vor.u32 %v226, 8388608
    %v228 = vsub.s32 0, %v227
    %v229 = vadd.s32 %v224, 1
    %vm230 = vcmp.gt.s32.totalorder %v229, 0
    %v231 = vsel %vm230, %v229, 0
    %v232 = vshrl.u32 %v231, 5
    %v233 = vand.u32 %v231, 31
    %v234 = vsub.s32 32, %v233
    %v235 = vshrl.u32 683565275, %v234
    %v236 = vshll.u32 683565275, %v233
    %v237 = vshrl.u32 2475754826, %v234
    %v238 = vor.u32 %v236, %v237
    %v239 = vshll.u32 2475754826, %v233
    %v240 = vshrl.u32 2131351028, %v234
    %v241 = vor.u32 %v239, %v240
    %v242 = vshll.u32 2131351028, %v233
    %v243 = vshrl.u32 2102212464, %v234
    %v244 = vor.u32 %v242, %v243
    %v245 = vshll.u32 2102212464, %v233
    %v246 = vshrl.u32 920167782, %v234
    %v247 = vor.u32 %v245, %v246
    %v248 = vshll.u32 920167782, %v233
    %v249 = vshrl.u32 1326507024, %v234
    %v250 = vor.u32 %v248, %v249
    %vm251 = vcmp.lt.s32.totalorder %v232, 1
    %vm252 = vcmp.lt.s32.totalorder %v232, 2
    %vm253 = vcmp.lt.s32.totalorder %v232, 3
    %vm254 = vcmp.lt.s32.totalorder %v232, 4
    %v255 = vsel %vm251, %v235, %v238
    %v256 = vsel %vm254, %v244, 2102212464
    %v257 = vsel %vm253, %v241, %v256
    %v258 = vsel %vm252, %v255, %v257
    %v259 = vsel %vm251, %v238, %v241
    %v260 = vsel %vm254, %v247, 920167782
    %v261 = vsel %vm253, %v244, %v260
    %v262 = vsel %vm252, %v259, %v261
    %v263 = vsel %vm251, %v241, %v244
    %v264 = vsel %vm254, %v250, 1326507024
    %v265 = vsel %vm253, %v247, %v264
    %v266 = vsel %vm252, %v263, %v265
    %v267 = vshll.u32 %v227, 8
    %v268 = vmul.u32.u64.compose %v267, %v266
    %v269 = vextract.low.u32 %v268
    %v270 = vextract.high.u32 %v268
    %v271 = vmul.u32.u64.compose %v267, %v262
    %v272 = vextract.low.u32 %v271
    %v273 = vextract.high.u32 %v271
    %v274 = vmul.u32 %v267, %v258
    %v275 = vadd.s32 %v270, %v272
    %vm276 = vc.u32 %v270, %v272
    %v277 = vadd.s32 %v273, 1
    %v278 = vsel %vm276, %v277, %v273
    %v279 = vadd.s32 %v274, %v278
    %v280 = vadd.s32 %v279, 536870912
    %v281 = vshrl.u32 %v280, 30
    %v282 = vshll.u32 %v281, 30
    %v283 = vsub.s32 %v279, %v282
    %vm284 = vcmp.lt.s32.totalorder %v283, 0
    %v285 = vsub.s32 0, %v283
    %v286 = vsel %vm284, %v285, %v283
    %v287 = vclz %v286
    %v288 = vsub.s32 %v287, 2
    %vm289 = vcmp.gt.s32.totalorder 0, %v288
    %v290 = vsel %vm289, 0, %v288
    %v291 = vsub.s32 32, %v290
    %v292 = vshll.u32 %v283, %v290
    %v293 = vshrl.u32 %v275, %v291
    %v294 = vor.u32 %v292, %v293
    %v295 = vsub.s32 4294967266, %v290
    %v296 = vadd.s32 %v295, 127
    %v297 = vshll.u32 %v296, 23
    %v298 = vor.u32 4788187, %v297
    %v299 = vand.u32 2147483647, %v298
    %v301 = vcvt.s32.f32 %v294
    %v302 = vmul.f32 %v301, %v299
    %v303 = vxor.u32 %v302, 2147483648
    %v304 = vsel %vm221, %v303, %v302
    %v305 = vsub.s32 4, %v281
    %v306 = vsel %vm221, %v305, %v281
    %v307 = vsel %vm220, %v115, %v304
    %v308 = vsel %vm220, 0, %v306
    %v309 = vcosq.f32.pop %v307
    %v310 = vsinq.f32.pop %v307
    %vm311 = vweird.f32 %v115
    %v312 = vand.u32 %v308, 3
    %vm313 = vcmp.lt.s32.totalorder %v312, 2
    %vm314 = vcmp.eq.s32.totalorder %v312, 0
    %v315 = vxor.u32 %v310, 2147483648
    %v316 = vsel %vm314, %v309, %v315
    %vm317 = vcmp.eq.s32.totalorder %v312, 2
    %v318 = vxor.u32 %v309, 2147483648
    %v319 = vsel %vm317, %v318, %v310
    %v320 = vsel %vm313, %v316, %v319
    %v321 = vsel %vm311, nan, %v320
    %v322 = vmul.f32 %v106, %v218
    %v323 = vmul.f32 %v113, %v321
    %v324 = vld [vmem:[#allocation4] sm:$0xff]
    %v325 = vld [vmem:[#allocation4 + $0x8] sm:$0xff]
    %v326 = vmul.f32 %v322, 0.09803922
    %v327 = vmul.f32 %v323, 0.09803922
    %v328 = vadd.f32 %v326, 0.0
    %v329 = vadd.f32 %v327, 0.0
    %v330 = vadd.f32 %v324, %v328
    %v331 = vadd.f32 %v325, %v329
    %v332 = vmax.f32 %v330, -1.0
    %v333 = vmax.f32 %v331, -1.0
    %v334 = vmin.f32 %v332, 1.0
    %v335 = vmin.f32 %v333, 1.0
    %336 = vst [vmem:[#allocation7] sm:$0xff] %v334
    %337 = vst [vmem:[#allocation7 + $0x8] sm:$0xff] %v335
    // Predicated region
    $region10: #{tpu_custom_call.1} parent=1 // pred_check
      _
    $region11: #{tpu_custom_call.1} parent=1 // pred_check_branch
      %339 = sbr.rel (0) target = $region13
    $region12: #{tpu_custom_call.1} parent=1 // pred_region
      %s341 = ssub.s32 256, 256
      %342 = vsyncadd [#allocation6], %s341
      %s343 = sshll.u32 [#allocation7], 4
      %s344 = int_to_ptr.vmem [resolvable:$true] %s343
      %349 = dma.vmem_to_hbm [thread:$0]  %s344, 256, %s2, [#allocation6], 128, 128, 8
    $region13: #{tpu_custom_call.1} parent=1 // pred_fallthru
      _
    // Predicated region
    $region14: #{tpu_custom_call.1} parent=1 // pred_check
      _
    $region15: #{tpu_custom_call.1} parent=1 // pred_check_branch
      %351 = sbr.rel (0) target = $region17
    $region16: #{tpu_custom_call.1} parent=1 // pred_region
      %352 = dma.done [#allocation6], 256
    $region17: #{tpu_custom_call.1} parent=1 // pred_fallthru
      _
    %353 = vsyncpa [#allocation5], 1
    %354 = vsyncpa [#allocation6], 1

</llo_original>
